<compile_context>
chip_gen: v5e
topology: v5e:2x2
jax: 0.10.0
libtpu: 0.0.40
codegen_flags: <defaults>
</compile_context>

<pallas_src>
import functools

import jax
import jax.numpy as jnp
from jax.experimental import pallas as pl
from jax.experimental.pallas import tpu as pltpu

_LANES = 128
_MAX_BLK_ROWS = 2048      # (2048, 128) f32 = 1 MiB per input block


def _dice_stats_kernel(pred_ref, targ_ref, out_ref, *, total_rows, blk_rows):
    """Writes per-block partial stats into out_ref (a (1, 8) SMEM block).

    out[0, 0] = min(pred)   (masked tail contributes 0.0: decision-neutral)
    out[0, 1] = max(pred)
    out[0, 2] = sum(pred)
    out[0, 3] = sum(sigmoid(pred))
    out[0, 4] = sum(target)
    out[0, 5] = sum(pred * target)
    out[0, 6] = sum(sigmoid(pred) * target)
    out[0, 7] = unused
    """
    i = pl.program_id(0)

    p_raw = pred_ref[...].astype(jnp.float32)
    t_raw = targ_ref[...].astype(jnp.float32)

    # Rows at/after (total_rows - i*blk_rows) are the unspecified tail of a
    # partial last block -> mask them (one iota + one compare per element).
    row = jax.lax.broadcasted_iota(jnp.int32, p_raw.shape, 0)
    valid = row < (total_rows - i * blk_rows)

    p = jnp.where(valid, p_raw, 0.0)    # 0.0 is sum-neutral and inside [0,1],
    t = jnp.where(valid, t_raw, 0.0)    # so it never flips the sigmoid branch.
    sig = jnp.where(valid, jax.nn.sigmoid(p_raw), 0.0)

    out_ref[0, 0] = jnp.min(p)
    out_ref[0, 1] = jnp.max(p)
    out_ref[0, 2] = jnp.sum(p)
    out_ref[0, 3] = jnp.sum(sig)
    out_ref[0, 4] = jnp.sum(t)
    out_ref[0, 5] = jnp.sum(p * t)
    out_ref[0, 6] = jnp.sum(sig * t)
    out_ref[0, 7] = 0.0


@functools.partial(jax.jit, static_argnames=("smooth",))
def dice_loss(pred, target, smooth=1e-06):
    """Pallas TPU implementation of DiceLoss.forward(pred, target)."""
    pred_flat = pred.reshape(-1)        # pred.view(-1), kept in native dtype
    targ_flat = target.reshape(-1)      # target.view(-1)
    n = pred_flat.shape[0]

    # Pad (with zeros) only up to the next multiple of 128 so the flat vector
    # can be viewed as (rows, 128). Pads are 0, so only sum(sigmoid(pred))
    # picks up exactly 0.5 per pad; corrected below.
    col_pad = (-n) % _LANES
    if col_pad:
        pred_flat = jnp.pad(pred_flat, (0, col_pad))
        targ_flat = jnp.pad(targ_flat, (0, col_pad))
    rows = (n + col_pad) // _LANES

    blk_rows = min(_MAX_BLK_ROWS, ((rows + 15) // 16) * 16)
    blocks = pl.cdiv(rows, blk_rows)

    pred2 = pred_flat.reshape(rows, _LANES)
    targ2 = targ_flat.reshape(rows, _LANES)

    kernel = functools.partial(_dice_stats_kernel,
                               total_rows=rows, blk_rows=blk_rows)

    stats = pl.pallas_call(
        kernel,
        out_shape=jax.ShapeDtypeStruct((blocks, 8), jnp.float32),
        grid=(blocks,),
        in_specs=[
            pl.BlockSpec((blk_rows, _LANES), lambda i: (i, 0)),
            pl.BlockSpec((blk_rows, _LANES), lambda i: (i, 0)),
        ],
        out_specs=pl.BlockSpec((1, 8), lambda i: (i, 0),
                               memory_space=pltpu.SMEM),
        compiler_params=pltpu.CompilerParams(
            dimension_semantics=("parallel",)),
    )(pred2, targ2)

    p_min = jnp.min(stats[:, 0])
    p_max = jnp.max(stats[:, 1])
    sum_pred = jnp.sum(stats[:, 2])
    sum_sig = jnp.sum(stats[:, 3]) - 0.5 * col_pad   # sigmoid(0) == 0.5 at pads
    sum_targ = jnp.sum(stats[:, 4])
    sum_pt = jnp.sum(stats[:, 5])
    sum_sigt = jnp.sum(stats[:, 6])

    apply_sig = jnp.logical_or(p_min < 0.0, p_max > 1.0)
    pred_sum = jnp.where(apply_sig, sum_sig, sum_pred)
    intersection = jnp.where(apply_sig, sum_sigt, sum_pt)

    union = pred_sum + sum_targ
    dice = (2.0 * intersection + smooth) / (union + smooth)
    return (1.0 - dice).astype(jnp.float32)


def _dice_loss_ref(pred, target, smooth=1e-06):
    """Pure-JAX reference mirroring the PyTorch module."""
    pred = pred.astype(jnp.float32)
    target = target.astype(jnp.float32)
    apply_sig = jnp.logical_or(pred.min() < 0.0, pred.max() > 1.0)
    pred = jnp.where(apply_sig, jax.nn.sigmoid(pred), pred)
    pf = pred.reshape(-1)
    tf = target.reshape(-1)
    inter = jnp.sum(pf * tf)
    union = jnp.sum(pf) + jnp.sum(tf)
    dice = (2.0 * inter + smooth) / (union + smooth)
    return 1.0 - dice


if __name__ == "__main__":
    key = jax.random.PRNGKey(0)
    k_pred, k_targ = jax.random.split(key)

    # Small SAM-style mask shapes: [batch=2, channels=4, H=16, W=16]
    pred = jax.random.normal(k_pred, (2, 4, 16, 16), dtype=jnp.float32)   # logits
    target = (jax.random.uniform(k_targ, (2, 4, 16, 16)) > 0.5).astype(jnp.float32)

    loss = jax.block_until_ready(dice_loss(pred, target))

    ref = _dice_loss_ref(pred, target)
    assert jnp.allclose(loss, ref, atol=1e-5, rtol=1e-5), (loss, ref)

    print("KERNEL_OK")
</pallas_src>

<mosaic_0001>
module attributes {stable_mosaic.version = 11 : i64} {
  func.func @_dice_stats_kernel(%arg0: i32, %arg1: memref<16x128xf32, #tpu.memory_space<vmem>>, %arg2: memref<16x128xf32, #tpu.memory_space<vmem>>, %arg3: memref<1x8xf32, #tpu.memory_space<smem>>) attributes {dimension_semantics = [#tpu.dimension_semantics<parallel>], iteration_bounds = array<i64: 1>, scalar_prefetch = 0 : i64, scratch_operands = 0 : i64, tpu.core_type = #tpu.core_type<tc>, window_params = [{transform_indices = @transform_0, window_bounds = array<i64: 16, 128>}, {transform_indices = @transform_1, window_bounds = array<i64: 16, 128>}, {transform_indices = @transform_2, window_bounds = array<i64: 1, 8>}]} {
    %c0 = arith.constant 0 : index
    %c0_0 = arith.constant 0 : index
    %0 = vector.load %arg1[%c0, %c0_0] : memref<16x128xf32, #tpu.memory_space<vmem>>, vector<16x128xf32>
    %c0_1 = arith.constant 0 : index
    %c0_2 = arith.constant 0 : index
    %1 = vector.load %arg2[%c0_1, %c0_2] : memref<16x128xf32, #tpu.memory_space<vmem>>, vector<16x128xf32>
    %2 = tpu.iota {dimensions = array<i32: 0>} : vector<16x128xi32>
    %c16_i32 = arith.constant 16 : i32
    %3 = arith.muli %arg0, %c16_i32 : i32
    %c16_i32_3 = arith.constant 16 : i32
    %4 = arith.subi %c16_i32_3, %3 : i32
    %5 = vector.broadcast %4 : i32 to vector<16x128xi32>
    %6 = arith.cmpi slt, %2, %5 : vector<16x128xi32>
    %cst = arith.constant 0.000000e+00 : f32
    %7 = vector.broadcast %cst : f32 to vector<16x128xf32>
    %8 = arith.select %6, %0, %7 : vector<16x128xi1>, vector<16x128xf32>
    %cst_4 = arith.constant 0.000000e+00 : f32
    %9 = vector.broadcast %cst_4 : f32 to vector<16x128xf32>
    %10 = arith.select %6, %1, %9 : vector<16x128xi1>, vector<16x128xf32>
    %11 = arith.negf %0 : vector<16x128xf32>
    %12 = math.exp %11 : vector<16x128xf32>
    %cst_5 = arith.constant 1.000000e+00 : f32
    %13 = vector.broadcast %cst_5 : f32 to vector<16x128xf32>
    %14 = arith.addf %13, %12 : vector<16x128xf32>
    %15 = arith.divf %13, %14 : vector<16x128xf32>
    %cst_6 = arith.constant 0.000000e+00 : f32
    %16 = vector.broadcast %cst_6 : f32 to vector<16x128xf32>
    %17 = arith.select %6, %15, %16 : vector<16x128xi1>, vector<16x128xf32>
    %18 = vector.shape_cast %8 : vector<16x128xf32> to vector<1x16x128xf32>
    %cst_7 = arith.constant dense<0x7F800000> : vector<1xf32>
    %19 = vector.multi_reduction <minimumf>, %18, %cst_7 [1, 2] : vector<1x16x128xf32> to vector<1xf32>
    %20 = vector.shape_cast %19 : vector<1xf32> to vector<1x1x1xf32>
    %21 = vector.extract %20[0, 0, 0] : f32 from vector<1x1x1xf32>
    %c0_8 = arith.constant 0 : index
    %c0_9 = arith.constant 0 : index
    %22 = memref.load %arg3[%c0_8, %c0_9] : memref<1x8xf32, #tpu.memory_space<smem>>
    memref.store %21, %arg3[%c0_8, %c0_9] : memref<1x8xf32, #tpu.memory_space<smem>>
    %23 = vector.shape_cast %8 : vector<16x128xf32> to vector<1x16x128xf32>
    %cst_10 = arith.constant dense<0xFF800000> : vector<1xf32>
    %24 = vector.multi_reduction <maximumf>, %23, %cst_10 [1, 2] : vector<1x16x128xf32> to vector<1xf32>
    %25 = vector.shape_cast %24 : vector<1xf32> to vector<1x1x1xf32>
    %26 = vector.extract %25[0, 0, 0] : f32 from vector<1x1x1xf32>
    %c0_11 = arith.constant 0 : index
    %c1 = arith.constant 1 : index
    %27 = memref.load %arg3[%c0_11, %c1] : memref<1x8xf32, #tpu.memory_space<smem>>
    memref.store %26, %arg3[%c0_11, %c1] : memref<1x8xf32, #tpu.memory_space<smem>>
    %28 = vector.shape_cast %8 : vector<16x128xf32> to vector<1x16x128xf32>
    %cst_12 = arith.constant dense<0.000000e+00> : vector<1xf32>
    %29 = vector.multi_reduction <add>, %28, %cst_12 [1, 2] : vector<1x16x128xf32> to vector<1xf32>
    %30 = vector.shape_cast %29 : vector<1xf32> to vector<1x1x1xf32>
    %31 = vector.extract %30[0, 0, 0] : f32 from vector<1x1x1xf32>
    %c0_13 = arith.constant 0 : index
    %c2 = arith.constant 2 : index
    %32 = memref.load %arg3[%c0_13, %c2] : memref<1x8xf32, #tpu.memory_space<smem>>
    memref.store %31, %arg3[%c0_13, %c2] : memref<1x8xf32, #tpu.memory_space<smem>>
    %33 = vector.shape_cast %17 : vector<16x128xf32> to vector<1x16x128xf32>
    %cst_14 = arith.constant dense<0.000000e+00> : vector<1xf32>
    %34 = vector.multi_reduction <add>, %33, %cst_14 [1, 2] : vector<1x16x128xf32> to vector<1xf32>
    %35 = vector.shape_cast %34 : vector<1xf32> to vector<1x1x1xf32>
    %36 = vector.extract %35[0, 0, 0] : f32 from vector<1x1x1xf32>
    %c0_15 = arith.constant 0 : index
    %c3 = arith.constant 3 : index
    %37 = memref.load %arg3[%c0_15, %c3] : memref<1x8xf32, #tpu.memory_space<smem>>
    memref.store %36, %arg3[%c0_15, %c3] : memref<1x8xf32, #tpu.memory_space<smem>>
    %38 = vector.shape_cast %10 : vector<16x128xf32> to vector<1x16x128xf32>
    %cst_16 = arith.constant dense<0.000000e+00> : vector<1xf32>
    %39 = vector.multi_reduction <add>, %38, %cst_16 [1, 2] : vector<1x16x128xf32> to vector<1xf32>
    %40 = vector.shape_cast %39 : vector<1xf32> to vector<1x1x1xf32>
    %41 = vector.extract %40[0, 0, 0] : f32 from vector<1x1x1xf32>
    %c0_17 = arith.constant 0 : index
    %c4 = arith.constant 4 : index
    %42 = memref.load %arg3[%c0_17, %c4] : memref<1x8xf32, #tpu.memory_space<smem>>
    memref.store %41, %arg3[%c0_17, %c4] : memref<1x8xf32, #tpu.memory_space<smem>>
    %43 = arith.mulf %8, %10 : vector<16x128xf32>
    %44 = vector.shape_cast %43 : vector<16x128xf32> to vector<1x16x128xf32>
    %cst_18 = arith.constant dense<0.000000e+00> : vector<1xf32>
    %45 = vector.multi_reduction <add>, %44, %cst_18 [1, 2] : vector<1x16x128xf32> to vector<1xf32>
    %46 = vector.shape_cast %45 : vector<1xf32> to vector<1x1x1xf32>
    %47 = vector.extract %46[0, 0, 0] : f32 from vector<1x1x1xf32>
    %c0_19 = arith.constant 0 : index
    %c5 = arith.constant 5 : index
    %48 = memref.load %arg3[%c0_19, %c5] : memref<1x8xf32, #tpu.memory_space<smem>>
    memref.store %47, %arg3[%c0_19, %c5] : memref<1x8xf32, #tpu.memory_space<smem>>
    %49 = arith.mulf %17, %10 : vector<16x128xf32>
    %50 = vector.shape_cast %49 : vector<16x128xf32> to vector<1x16x128xf32>
    %cst_20 = arith.constant dense<0.000000e+00> : vector<1xf32>
    %51 = vector.multi_reduction <add>, %50, %cst_20 [1, 2] : vector<1x16x128xf32> to vector<1xf32>
    %52 = vector.shape_cast %51 : vector<1xf32> to vector<1x1x1xf32>
    %53 = vector.extract %52[0, 0, 0] : f32 from vector<1x1x1xf32>
    %c0_21 = arith.constant 0 : index
    %c6 = arith.constant 6 : index
    %54 = memref.load %arg3[%c0_21, %c6] : memref<1x8xf32, #tpu.memory_space<smem>>
    memref.store %53, %arg3[%c0_21, %c6] : memref<1x8xf32, #tpu.memory_space<smem>>
    %cst_22 = arith.constant 0.000000e+00 : f32
    %c0_23 = arith.constant 0 : index
    %c7 = arith.constant 7 : index
    %55 = memref.load %arg3[%c0_23, %c7] : memref<1x8xf32, #tpu.memory_space<smem>>
    memref.store %cst_22, %arg3[%c0_23, %c7] : memref<1x8xf32, #tpu.memory_space<smem>>
    return
  }
  func.func @transform_0(%arg0: i32) -> (i32, i32) {
    %c0_i32 = arith.constant 0 : i32
    %c0_i32_0 = arith.constant 0 : i32
    return %arg0, %c0_i32 : i32, i32
  }
  func.func @transform_1(%arg0: i32) -> (i32, i32) {
    %c0_i32 = arith.constant 0 : i32
    %c0_i32_0 = arith.constant 0 : i32
    return %arg0, %c0_i32 : i32, i32
  }
  func.func @transform_2(%arg0: i32) -> (i32, i32) {
    %c0_i32 = arith.constant 0 : i32
    %c0_i32_0 = arith.constant 0 : i32
    return %arg0, %c0_i32 : i32, i32
  }
}

</mosaic_0001>

<llo_original>
// kernel: dice_loss.1
$region0: #{dice_loss.1}
  #allocation0 [shape = 'u32[]', space=smem, size = 0x4, offset = 0x4, fixed_abs, tag = 'smem constant byte address 0x4 - core index']
  #allocation1 [shape = 'u32[72,128]{1,0:T(1,128)}', space=vmem, size = 0x9000, scoped, tag = 'internal scratch']
  %s0 = inlined_call_operand.vmem [shape: f32[16,128], index: 0, kind: input, shape index: {}]
  %s1 = inlined_call_operand.vmem [shape: f32[16,128], index: 1, kind: input, shape index: {}]
  %s2 = inlined_call_operand.vmem [shape: f32[1,8], index: 2, kind: output, shape index: {}]
  %s3 = sld [smem:[#allocation0]]
  $region18: #{dice_loss.1} parent=0
    _
  %s5 = ssub.s32 1, %s3
  %s6 = scalar_select 0, %s5, %s3
  $region1: #{dice_loss.1} parent=0
    #allocation2 [shape = 'u8[512]{0}', space=smem, size = 0x200, scoped, tag = 'output window, operand 0, single buffered']
    #allocation3 [shape = 's32[1]{0}', space=sflag, size = 0x4, scoped, tag = 'scoped memory for dice_loss.1']
    %7 = vsyncpa [#allocation3], 0
    // Predicated region
    $region2: #{dice_loss.1} parent=1 // pred_check
      _
    $region3: #{dice_loss.1} parent=1 // pred_check_branch
      %9 = sbr.rel (0) target = $region5
    $region4: #{dice_loss.1} parent=1 // pred_region
      _
    $region5: #{dice_loss.1} parent=1 // pred_fallthru
      _
    // Predicated region
    $region6: #{dice_loss.1} parent=1 // pred_check
      _
    $region7: #{dice_loss.1} parent=1 // pred_check_branch
      %11 = sbr.rel (0) target = $region9
    $region8: #{dice_loss.1} parent=1 // pred_region
      _
    $region9: #{dice_loss.1} parent=1 // pred_fallthru
      _
    %v12 = vld [vmem:[%s0] sm:$0xff]
    %v13 = vld [vmem:[%s0 + $0x8] sm:$0xff]
    %v14 = vld [vmem:[%s1] sm:$0xff]
    %v15 = vld [vmem:[%s1 + $0x8] sm:$0xff]
    %v16 = vlaneseq
    %v17 = vshrl.u32 %v16, 7
    %v18 = vadd.s32 %v17, 8
    %s19 = smul.u32 0, 16
    %s20 = ssub.s32 16, %s19
    %v21 = vstv %s20
    %vm22 = vcmp.lt.s32.totalorder %v17, %v21
    %vm23 = vcmp.lt.s32.totalorder %v18, %v21
    %v24 = vsel %vm22, %v12, 0.0
    %v25 = vsel %vm23, %v13, 0.0
    %v26 = vsel %vm22, %v14, 0.0
    %v27 = vsel %vm23, %v15, 0.0
    %v28 = vxor.u32 %v12, 2147483648
    %v29 = vxor.u32 %v13, 2147483648
    %v30 = vmul.f32 %v28, 1.442695
    %v31 = vpow.pop %v30
    %v32 = vmul.f32 %v29, 1.442695
    %v33 = vpow.pop %v32
    %v34 = vadd.f32 %v31, 1.0
    %v35 = vadd.f32 %v33, 1.0
    %v36 = vrcp.pop %v34
    %v37 = vmul.f32 %v34, %v36
    %v38 = vsub.f32 1.0, %v37
    %v39 = vmul.f32 %v36, %v38
    %v40 = vadd.f32 %v36, %v39
    %vm41 = vweird.f32 %v34
    %vm42 = vweird.f32 %v36
    %vm43 = vmor %vm41, %vm42
    %v44 = vsel %vm43, %v36, %v40
    %v45 = vand.u32 2147483647, %v34
    %vm46 = vcmp.eq.f32.partialorder %v45, 8.507059e+37
    %v47 = vand.u32 %v34, 2147483648
    %v48 = vor.u32 1.1754944e-38, %v47
    %v49 = vsel %vm46, %v48, %v44
    %v50 = vmul.f32 1.0, %v49
    %v51 = vrcp.pop %v35
    %v52 = vmul.f32 %v35, %v51
    %v53 = vsub.f32 1.0, %v52
    %v54 = vmul.f32 %v51, %v53
    %v55 = vadd.f32 %v51, %v54
    %vm56 = vweird.f32 %v35
    %vm57 = vweird.f32 %v51
    %vm58 = vmor %vm56, %vm57
    %v59 = vsel %vm58, %v51, %v55
    %v60 = vand.u32 2147483647, %v35
    %vm61 = vcmp.eq.f32.partialorder %v60, 8.507059e+37
    %v62 = vand.u32 %v35, 2147483648
    %v63 = vor.u32 1.1754944e-38, %v62
    %v64 = vsel %vm61, %v63, %v59
    %v65 = vmul.f32 1.0, %v64
    %v66 = vsel %vm22, %v50, 0.0
    %v67 = vsel %vm23, %v65, 0.0
    %v68 = vmin.f32 %v24, %v25
    %69 = vmin.xlane.f32.xlu0 %v68
    %v70 = vpop.xlane.xlu0 %69
    %v71 = vrot.slane %v70, 4
    %v72 = vmin.f32 %v70, %v71
    %v73 = vrot.slane %v72, 2
    %v74 = vmin.f32 %v72, %v73
    %v75 = vrot.slane %v74, 1
    %v76 = vmin.f32 %v74, %v75
    %s77 = vtos %v76
    %s78 = scalar_lea.smem [#allocation2], 0
    %79 = sst [smem:[%s78]] %s77
    %v80 = vmax.f32 %v24, %v25
    %81 = vmax.xlane.f32.xlu0 %v80
    %v82 = vpop.xlane.xlu0 %81
    %v83 = vrot.slane %v82, 4
    %v84 = vmax.f32 %v82, %v83
    %v85 = vrot.slane %v84, 2
    %v86 = vmax.f32 %v84, %v85
    %v87 = vrot.slane %v86, 1
    %v88 = vmax.f32 %v86, %v87
    %s89 = vtos %v88
    %s90 = scalar_lea.smem [#allocation2], 1
    %91 = sst [smem:[%s90]] %s89
    %v92 = vadd.f32 %v24, %v25
    %93 = vadd.xlane.f32.xlu0 %v92
    %v94 = vpop.xlane.xlu0 %93
    %v95 = vrot.slane %v94, 4
    %v96 = vadd.f32 %v94, %v95
    %v97 = vrot.slane %v96, 2
    %v98 = vadd.f32 %v96, %v97
    %v99 = vrot.slane %v98, 1
    %v100 = vadd.f32 %v98, %v99
    %s101 = vtos %v100
    %s102 = scalar_lea.smem [#allocation2], 2
    %103 = sst [smem:[%s102]] %s101
    %v104 = vadd.f32 %v66, %v67
    %105 = vadd.xlane.f32.xlu0 %v104
    %v106 = vpop.xlane.xlu0 %105
    %v107 = vrot.slane %v106, 4
    %v108 = vadd.f32 %v106, %v107
    %v109 = vrot.slane %v108, 2
    %v110 = vadd.f32 %v108, %v109
    %v111 = vrot.slane %v110, 1
    %v112 = vadd.f32 %v110, %v111
    %s113 = vtos %v112
    %s114 = scalar_lea.smem [#allocation2], 3
    %115 = sst [smem:[%s114]] %s113
    %v116 = vadd.f32 %v26, %v27
    %117 = vadd.xlane.f32.xlu0 %v116
    %v118 = vpop.xlane.xlu0 %117
    %v119 = vrot.slane %v118, 4
    %v120 = vadd.f32 %v118, %v119
    %v121 = vrot.slane %v120, 2
    %v122 = vadd.f32 %v120, %v121
    %v123 = vrot.slane %v122, 1
    %v124 = vadd.f32 %v122, %v123
    %s125 = vtos %v124
    %s126 = scalar_lea.smem [#allocation2], 4
    %127 = sst [smem:[%s126]] %s125
    %v128 = vmul.f32 %v24, %v26
    %v129 = vmul.f32 %v25, %v27
    %v130 = vadd.f32 %v128, %v129
    %131 = vadd.xlane.f32.xlu0 %v130
    %v132 = vpop.xlane.xlu0 %131
    %v133 = vrot.slane %v132, 4
    %v134 = vadd.f32 %v132, %v133
    %v135 = vrot.slane %v134, 2
    %v136 = vadd.f32 %v134, %v135
    %v137 = vrot.slane %v136, 1
    %v138 = vadd.f32 %v136, %v137
    %s139 = vtos %v138
    %s140 = scalar_lea.smem [#allocation2], 5
    %141 = sst [smem:[%s140]] %s139
    %v142 = vmul.f32 %v66, %v26
    %v143 = vmul.f32 %v67, %v27
    %v144 = vadd.f32 %v142, %v143
    %145 = vadd.xlane.f32.xlu0 %v144
    %v146 = vpop.xlane.xlu0 %145
    %v147 = vrot.slane %v146, 4
    %v148 = vadd.f32 %v146, %v147
    %v149 = vrot.slane %v148, 2
    %v150 = vadd.f32 %v148, %v149
    %v151 = vrot.slane %v150, 1
    %v152 = vadd.f32 %v150, %v151
    %s153 = vtos %v152
    %s154 = scalar_lea.smem [#allocation2], 6
    %155 = sst [smem:[%s154]] %s153
    %s156 = scalar_lea.smem [#allocation2], 7
    %157 = sst [smem:[%s156]] 0.0
    // Predicated region
    $region10: #{dice_loss.1} parent=1 // pred_check
      _
    $region11: #{dice_loss.1} parent=1 // pred_check_branch
      %159 = sbr.rel (0) target = $region13
    $region12: #{dice_loss.1} parent=1 // pred_region
      %161 = vsyncadd [#allocation3], 0
      %s163 = sshll.u32 %s2, 4
      %s164 = int_to_ptr.vmem [resolvable:$true] %s163
      %166 = dma.smem_to_vmem [#allocation2], 16, %s164, [#allocation3]
    $region13: #{dice_loss.1} parent=1 // pred_fallthru
      _
    // Predicated region
    $region14: #{dice_loss.1} parent=1 // pred_check
      _
    $region15: #{dice_loss.1} parent=1 // pred_check_branch
      %168 = sbr.rel (0) target = $region17
    $region16: #{dice_loss.1} parent=1 // pred_region
      %170 = dma.done [#allocation3], 16
    $region17: #{dice_loss.1} parent=1 // pred_fallthru
      _
    %171 = sfence
    %172 = vsyncpa [#allocation3], 1

</llo_original>
